<compile_context>
chip_gen: v6e
topology: v6e:2x2x1
jax: 0.10.0
libtpu: 0.0.40
codegen_flags: <defaults>
</compile_context>

<pallas_src>
import numpy as np
import jax
import jax.numpy as jnp
from jax.experimental import pallas as pl
from jax.experimental.pallas import tpu as pltpu


def _fused_kernel(x_ref, w1_ref, b1_ref, w2_ref, b2_ref,
                  lw1_ref, lb1_ref, lw2_ref, lb2_ref, o_ref):
    """Whole forward pass, whole batch, gridless: 4 MXU matmuls + bias/ReLU.

    x_ref   : (B, C0*L0)     input, NCL-flattened per batch (pure reshape of x)
    w1_ref  : (C0*L0, L1*C1) conv-1 as banded dense matrix (im2col folded into weight)
    b1_ref  : (1, L1*C1)     conv-1 bias tiled per output position
    w2_ref  : (L1*C1, L2*C2) conv-2 as banded dense matrix
    b2_ref  : (1, L2*C2)
    lw1_ref : (L2*C2, H)     linear-1 weight, nn.Flatten permutation folded in
    lb1_ref : (1, H)
    lw2_ref : (H, O)
    lb2_ref : (1, O)
    o_ref   : (B, O)
    """
    # Conv1 + bias + ReLU (one batch-stacked matmul).
    h1 = jnp.maximum(
        jnp.dot(x_ref[...], w1_ref[...], preferred_element_type=jnp.float32)
        + b1_ref[...], 0.0)                                   # (B, L1*C1)
    # Conv2 + bias + ReLU.
    h2 = jnp.maximum(
        jnp.dot(h1, w2_ref[...], preferred_element_type=jnp.float32)
        + b2_ref[...], 0.0)                                   # (B, L2*C2)
    # Flatten is implicit (folded into lw1); Linear1 + ReLU.
    h3 = jnp.maximum(
        jnp.dot(h2, lw1_ref[...], preferred_element_type=jnp.float32)
        + lb1_ref[...], 0.0)                                  # (B, H)
    # Linear2.
    o_ref[...] = (jnp.dot(h3, lw2_ref[...], preferred_element_type=jnp.float32)
                  + lb2_ref[...]).astype(o_ref.dtype)         # (B, O)


def prepare_params(params):
    """ONE-TIME parameter prep (host-side): fold im2col + nn.Flatten into weights.

    params: (((C1,C0,K1), (C1,)), ((C2,C1,K2), (C2,)), ((H,F), (H,)), ((O,H), (O,)))
    Returns 8 device arrays consumed directly by the kernel.
    """
    (w1, b1), (w2, b2), (lw1, lb1), (lw2, lb2) = [
        tuple(np.asarray(t, np.float32) for t in layer) for layer in params]
    C1, C0, K1 = w1.shape
    C2, _, K2 = w2.shape
    H, F = lw1.shape
    O = lw2.shape[0]
    L2 = F // C2                       # spatial sizes implied by the Flatten width
    L1 = L2 + K2 - 1
    L0 = L1 + K1 - 1
    F1 = L1 * C1

    # Conv1 as a banded dense matmul on the NCL-flat input (row index c0*L0 + l0);
    # output lane order l1*C1 + c1 (position-major, channel-minor).
    W1 = np.zeros((C0 * L0, F1), np.float32)
    for c0 in range(C0):
        for l1 in range(L1):
            for k in range(K1):
                W1[c0 * L0 + l1 + k, l1 * C1:(l1 + 1) * C1] = w1[:, c0, k]
    B1 = np.tile(b1, L1)[None, :]                              # (1, L1*C1)

    # Conv2 as a banded dense matmul on the (l1*C1 + c1)-ordered conv1 output;
    # output lane order l2*C2 + c2.
    W2 = np.zeros((F1, L2 * C2), np.float32)
    for l2 in range(L2):
        for k in range(K2):
            W2[(l2 + k) * C1:(l2 + k + 1) * C1,
               l2 * C2:(l2 + 1) * C2] = w2[:, :, k].T
    B2 = np.tile(b2, L2)[None, :]                              # (1, L2*C2)

    # Linear1: fold nn.Flatten's NCL feature order (c2*L2 + l2) into the
    # (l2*C2 + c2) order the kernel produces, and pre-transpose.
    LW1 = np.transpose(lw1.reshape(H, C2, L2), (2, 1, 0)).reshape(L2 * C2, H)
    LB1 = lb1[None, :]
    LW2 = np.ascontiguousarray(lw2.T)                          # (H, O)
    LB2 = lb2[None, :]

    return tuple(jnp.asarray(a) for a in (W1, B1, W2, B2, LW1, LB1, LW2, LB2))


@jax.jit
def double_cnn_forward(x_ncl, prepped):
    """x_ncl: (B, C_in, L) float32, PyTorch NCL convention. prepped: from prepare_params."""
    W1, B1, W2, B2, LW1, LB1, LW2, LB2 = prepped
    Bsz = x_ncl.shape[0]
    O = LW2.shape[1]

    # Only per-call wrapper op: a trivial flatten of the 512-byte input.
    # allow_input_fusion on operand 0 lets XLA fold it into the custom call.
    xflat = x_ncl.reshape(Bsz, -1)                             # (B, C0*L0)

    flops = 2 * Bsz * (W1.shape[0] * W1.shape[1] + W2.shape[0] * W2.shape[1]
                       + LW1.shape[0] * LW1.shape[1] + LW2.shape[0] * LW2.shape[1])
    bytes_accessed = 4 * (xflat.size + sum(a.size for a in prepped) + Bsz * O)

    vmem = lambda: pl.BlockSpec(memory_space=pltpu.MemorySpace.VMEM)
    return pl.pallas_call(
        _fused_kernel,
        out_shape=jax.ShapeDtypeStruct((Bsz, O), jnp.float32),
        in_specs=[vmem() for _ in range(9)],
        out_specs=vmem(),
        compiler_params=pltpu.CompilerParams(
            allow_input_fusion=[True] + [False] * 8),
        cost_estimate=pl.CostEstimate(flops=flops, transcendentals=0,
                                      bytes_accessed=bytes_accessed),
    )(xflat, W1, B1, W2, B2, LW1, LB1, LW2, LB2)


def _reference_forward(x_ncl, params):
    """Plain-JAX reference (same math, no Pallas) for a correctness check."""
    (w1, b1), (w2, b2), (lw1, lb1), (lw2, lb2) = params

    def conv1d(x, w, b):                             # x (B,Cin,L), w (Cout,Cin,K)
        K = w.shape[2]
        Lout = x.shape[2] - K + 1
        out = jnp.zeros((x.shape[0], w.shape[0], Lout), jnp.float32)
        for k in range(K):
            out = out + jnp.einsum('oc,bcl->bol', w[:, :, k], x[:, :, k:k + Lout])
        return out + b[None, :, None]

    h = jax.nn.relu(conv1d(x_ncl, w1, b1))
    h = jax.nn.relu(conv1d(h, w2, b2))
    h = h.reshape(h.shape[0], -1)
    h = jax.nn.relu(h @ lw1.T + lb1)
    return h @ lw2.T + lb2


def _make_params(key):
    """Deterministic init mimicking PyTorch defaults (uniform +/- 1/sqrt(fan_in)).

    Module params: [(4, 8, 3), (8, 8, 3), (96, 32), (32, 10)]
      -> Conv1d(4,8,3), Conv1d(8,8,3), Linear(96,32), Linear(32,10)
    """
    ks = jax.random.split(key, 8)

    def u(k, shape, fan_in):
        bound = 1.0 / float(fan_in) ** 0.5
        return jax.random.uniform(k, shape, jnp.float32, -bound, bound)

    w1 = u(ks[0], (8, 4, 3), 4 * 3);  b1 = u(ks[1], (8,), 4 * 3)
    w2 = u(ks[2], (8, 8, 3), 8 * 3);  b2 = u(ks[3], (8,), 8 * 3)
    lw1 = u(ks[4], (32, 96), 96);     lb1 = u(ks[5], (32,), 96)
    lw2 = u(ks[6], (10, 32), 32);     lb2 = u(ks[7], (10,), 32)
    return ((w1, b1), (w2, b2), (lw1, lb1), (lw2, lb2))


if __name__ == "__main__":
    key = jax.random.PRNGKey(0)
    pkey, xkey = jax.random.split(key)
    params = _make_params(pkey)
    prepped = prepare_params(params)     # one-time prep, outside the per-call jit

    # Small shapes consistent with the module: batch=2, C_in=4, L=16.
    # After two valid k=3 convs: L=12, channels=8 -> Flatten features 96.
    x = jax.random.normal(xkey, (2, 4, 16), jnp.float32)

    out = jax.block_until_ready(double_cnn_forward(x, prepped))
    assert out.shape == (2, 10), out.shape

    ref = _reference_forward(x, params)
    err = float(jnp.max(jnp.abs(out - ref)))
    assert jnp.allclose(out, ref, rtol=1e-5, atol=1e-5), err

    print("KERNEL_OK")
</pallas_src>

<mosaic_0001>
module attributes {stable_mosaic.version = 11 : i64} {
  func.func @_fused_kernel(%arg0: memref<2x64xf32, #tpu.memory_space<vmem>>, %arg1: memref<64x112xf32, #tpu.memory_space<vmem>>, %arg2: memref<1x112xf32, #tpu.memory_space<vmem>>, %arg3: memref<112x96xf32, #tpu.memory_space<vmem>>, %arg4: memref<1x96xf32, #tpu.memory_space<vmem>>, %arg5: memref<96x32xf32, #tpu.memory_space<vmem>>, %arg6: memref<1x32xf32, #tpu.memory_space<vmem>>, %arg7: memref<32x10xf32, #tpu.memory_space<vmem>>, %arg8: memref<1x10xf32, #tpu.memory_space<vmem>>, %arg9: memref<2x10xf32, #tpu.memory_space<vmem>>) attributes {dimension_semantics = [], scalar_prefetch = 0 : i64, scratch_operands = 0 : i64, tpu.core_type = #tpu.core_type<tc>} {
    %c0 = arith.constant 0 : index
    %c0_0 = arith.constant 0 : index
    %0 = vector.load %arg0[%c0, %c0_0] : memref<2x64xf32, #tpu.memory_space<vmem>>, vector<2x64xf32>
    %c0_1 = arith.constant 0 : index
    %c0_2 = arith.constant 0 : index
    %1 = vector.load %arg1[%c0_1, %c0_2] : memref<64x112xf32, #tpu.memory_space<vmem>>, vector<64x112xf32>
    %cst = arith.constant dense<0.000000e+00> : vector<2x112xf32>
    %2 = tpu.matmul %0, %1, %cst {dimension_numbers = #tpu.dot_dimension_numbers<[1], [0], [0], [1], [0, 0, 1, 1], [], []>} : vector<2x64xf32>, vector<64x112xf32>, vector<2x112xf32> -> vector<2x112xf32>
    %c0_3 = arith.constant 0 : index
    %c0_4 = arith.constant 0 : index
    %3 = vector.load %arg2[%c0_3, %c0_4] : memref<1x112xf32, #tpu.memory_space<vmem>>, vector<1x112xf32>
    %4 = vector.broadcast %3 : vector<1x112xf32> to vector<2x112xf32>
    %5 = arith.addf %2, %4 : vector<2x112xf32>
    %cst_5 = arith.constant 0.000000e+00 : f32
    %6 = vector.broadcast %cst_5 : f32 to vector<2x112xf32>
    %7 = arith.maximumf %5, %6 : vector<2x112xf32>
    %c0_6 = arith.constant 0 : index
    %c0_7 = arith.constant 0 : index
    %8 = vector.load %arg3[%c0_6, %c0_7] : memref<112x96xf32, #tpu.memory_space<vmem>>, vector<112x96xf32>
    %cst_8 = arith.constant dense<0.000000e+00> : vector<2x96xf32>
    %9 = tpu.matmul %7, %8, %cst_8 {dimension_numbers = #tpu.dot_dimension_numbers<[1], [0], [0], [1], [0, 0, 1, 1], [], []>} : vector<2x112xf32>, vector<112x96xf32>, vector<2x96xf32> -> vector<2x96xf32>
    %c0_9 = arith.constant 0 : index
    %c0_10 = arith.constant 0 : index
    %10 = vector.load %arg4[%c0_9, %c0_10] : memref<1x96xf32, #tpu.memory_space<vmem>>, vector<1x96xf32>
    %11 = vector.broadcast %10 : vector<1x96xf32> to vector<2x96xf32>
    %12 = arith.addf %9, %11 : vector<2x96xf32>
    %cst_11 = arith.constant 0.000000e+00 : f32
    %13 = vector.broadcast %cst_11 : f32 to vector<2x96xf32>
    %14 = arith.maximumf %12, %13 : vector<2x96xf32>
    %c0_12 = arith.constant 0 : index
    %c0_13 = arith.constant 0 : index
    %15 = vector.load %arg5[%c0_12, %c0_13] : memref<96x32xf32, #tpu.memory_space<vmem>>, vector<96x32xf32>
    %cst_14 = arith.constant dense<0.000000e+00> : vector<2x32xf32>
    %16 = tpu.matmul %14, %15, %cst_14 {dimension_numbers = #tpu.dot_dimension_numbers<[1], [0], [0], [1], [0, 0, 1, 1], [], []>} : vector<2x96xf32>, vector<96x32xf32>, vector<2x32xf32> -> vector<2x32xf32>
    %c0_15 = arith.constant 0 : index
    %c0_16 = arith.constant 0 : index
    %17 = vector.load %arg6[%c0_15, %c0_16] : memref<1x32xf32, #tpu.memory_space<vmem>>, vector<1x32xf32>
    %18 = vector.broadcast %17 : vector<1x32xf32> to vector<2x32xf32>
    %19 = arith.addf %16, %18 : vector<2x32xf32>
    %cst_17 = arith.constant 0.000000e+00 : f32
    %20 = vector.broadcast %cst_17 : f32 to vector<2x32xf32>
    %21 = arith.maximumf %19, %20 : vector<2x32xf32>
    %c0_18 = arith.constant 0 : index
    %c0_19 = arith.constant 0 : index
    %22 = vector.load %arg7[%c0_18, %c0_19] : memref<32x10xf32, #tpu.memory_space<vmem>>, vector<32x10xf32>
    %cst_20 = arith.constant dense<0.000000e+00> : vector<2x10xf32>
    %23 = tpu.matmul %21, %22, %cst_20 {dimension_numbers = #tpu.dot_dimension_numbers<[1], [0], [0], [1], [0, 0, 1, 1], [], []>} : vector<2x32xf32>, vector<32x10xf32>, vector<2x10xf32> -> vector<2x10xf32>
    %c0_21 = arith.constant 0 : index
    %c0_22 = arith.constant 0 : index
    %24 = vector.load %arg8[%c0_21, %c0_22] : memref<1x10xf32, #tpu.memory_space<vmem>>, vector<1x10xf32>
    %25 = vector.broadcast %24 : vector<1x10xf32> to vector<2x10xf32>
    %26 = arith.addf %23, %25 : vector<2x10xf32>
    %c0_23 = arith.constant 0 : index
    %c0_24 = arith.constant 0 : index
    %27 = vector.load %arg9[%c0_23, %c0_24] : memref<2x10xf32, #tpu.memory_space<vmem>>, vector<2x10xf32>
    tpu.vector_store %arg9[%c0_23, %c0_24], %26 {strides = array<i32>} : memref<2x10xf32, #tpu.memory_space<vmem>>, vector<2x10xf32>,
    return
  }
}

</mosaic_0001>

<llo_original>
// kernel: double_cnn_forward.1
$region0: #{double_cnn_forward.1}
  #allocation0 [shape = 'u32[]', space=smem, size = 0x4, offset = 0x4, fixed_abs, tag = 'smem constant byte address 0x4 - core index']
  #allocation1 [shape = 'u32[144,128]{1,0:T(1,128)}', space=vmem, size = 0x12000, scoped, tag = 'internal scratch']
  %s0 = inlined_call_operand.vmem [shape: f32[2,64], index: 0, kind: input, shape index: {}]
  %s1 = inlined_call_operand.vmem [shape: f32[64,112], index: 1, kind: input, shape index: {}]
  %s2 = inlined_call_operand.vmem [shape: f32[1,112], index: 2, kind: input, shape index: {}]
  %s3 = inlined_call_operand.vmem [shape: f32[112,96], index: 3, kind: input, shape index: {}]
  %s4 = inlined_call_operand.vmem [shape: f32[1,96], index: 4, kind: input, shape index: {}]
  %s5 = inlined_call_operand.vmem [shape: f32[96,32], index: 5, kind: input, shape index: {}]
  %s6 = inlined_call_operand.vmem [shape: f32[1,32], index: 6, kind: input, shape index: {}]
  %s7 = inlined_call_operand.vmem [shape: f32[32,10], index: 7, kind: input, shape index: {}]
  %s8 = inlined_call_operand.vmem [shape: f32[1,10], index: 8, kind: input, shape index: {}]
  %s9 = inlined_call_operand.hbm [shape: f32[2,10], index: 9, kind: output, shape index: {}]
  %s10 = sld [smem:[#allocation0]]
  $region46: #{double_cnn_forward.1} parent=0
    _
  %s12 = ssub.s32 1, %s10
  %s13 = scalar_select 0, %s12, %s10
  $region1: #{double_cnn_forward.1} parent=0
    #allocation2 [shape = 'u8[1024]{0}', space=vmem, size = 0x400, scoped, tag = 'output window, operand 0, single buffered']
    #allocation3 [shape = 's32[1]{0}', space=sflag, size = 0x4, scoped, tag = 'scoped memory for double_cnn_forward.1']
    %14 = vsyncpa [#allocation3], 0
    // Predicated region
    $region2: #{double_cnn_forward.1} parent=1 // pred_check
      _
    $region3: #{double_cnn_forward.1} parent=1 // pred_check_branch
      %16 = sbr.rel (0) target = $region5
    $region4: #{double_cnn_forward.1} parent=1 // pred_region
      _
    $region5: #{double_cnn_forward.1} parent=1 // pred_fallthru
      _
    // Predicated region
    $region6: #{double_cnn_forward.1} parent=1 // pred_check
      _
    $region7: #{double_cnn_forward.1} parent=1 // pred_check_branch
      %18 = sbr.rel (0) target = $region9
    $region8: #{double_cnn_forward.1} parent=1 // pred_region
      _
    $region9: #{double_cnn_forward.1} parent=1 // pred_fallthru
      _
    // Predicated region
    $region10: #{double_cnn_forward.1} parent=1 // pred_check
      _
    $region11: #{double_cnn_forward.1} parent=1 // pred_check_branch
      %20 = sbr.rel (0) target = $region13
    $region12: #{double_cnn_forward.1} parent=1 // pred_region
      _
    $region13: #{double_cnn_forward.1} parent=1 // pred_fallthru
      _
    // Predicated region
    $region14: #{double_cnn_forward.1} parent=1 // pred_check
      _
    $region15: #{double_cnn_forward.1} parent=1 // pred_check_branch
      %22 = sbr.rel (0) target = $region17
    $region16: #{double_cnn_forward.1} parent=1 // pred_region
      _
    $region17: #{double_cnn_forward.1} parent=1 // pred_fallthru
      _
    // Predicated region
    $region18: #{double_cnn_forward.1} parent=1 // pred_check
      _
    $region19: #{double_cnn_forward.1} parent=1 // pred_check_branch
      %24 = sbr.rel (0) target = $region21
    $region20: #{double_cnn_forward.1} parent=1 // pred_region
      _
    $region21: #{double_cnn_forward.1} parent=1 // pred_fallthru
      _
    // Predicated region
    $region22: #{double_cnn_forward.1} parent=1 // pred_check
      _
    $region23: #{double_cnn_forward.1} parent=1 // pred_check_branch
      %26 = sbr.rel (0) target = $region25
    $region24: #{double_cnn_forward.1} parent=1 // pred_region
      _
    $region25: #{double_cnn_forward.1} parent=1 // pred_fallthru
      _
    // Predicated region
    $region26: #{double_cnn_forward.1} parent=1 // pred_check
      _
    $region27: #{double_cnn_forward.1} parent=1 // pred_check_branch
      %28 = sbr.rel (0) target = $region29
    $region28: #{double_cnn_forward.1} parent=1 // pred_region
      _
    $region29: #{double_cnn_forward.1} parent=1 // pred_fallthru
      _
    // Predicated region
    $region30: #{double_cnn_forward.1} parent=1 // pred_check
      _
    $region31: #{double_cnn_forward.1} parent=1 // pred_check_branch
      %30 = sbr.rel (0) target = $region33
    $region32: #{double_cnn_forward.1} parent=1 // pred_region
      _
    $region33: #{double_cnn_forward.1} parent=1 // pred_fallthru
      _
    // Predicated region
    $region34: #{double_cnn_forward.1} parent=1 // pred_check
      _
    $region35: #{double_cnn_forward.1} parent=1 // pred_check_branch
      %32 = sbr.rel (0) target = $region37
    $region36: #{double_cnn_forward.1} parent=1 // pred_region
      _
    $region37: #{double_cnn_forward.1} parent=1 // pred_fallthru
      _
    %v33 = vld [vmem:[%s0] sm:$0x3]
    %v34 = vld [vmem:[%s1] sm:$0xff]
    %v35 = vld [vmem:[%s1 + $0x8] sm:$0xff]
    %v36 = vld [vmem:[%s1 + $0x10] sm:$0xff]
    %v37 = vld [vmem:[%s1 + $0x18] sm:$0xff]
    %v38 = vld [vmem:[%s1 + $0x20] sm:$0xff]
    %v39 = vld [vmem:[%s1 + $0x28] sm:$0xff]
    %v40 = vld [vmem:[%s1 + $0x30] sm:$0xff]
    %v41 = vld [vmem:[%s1 + $0x38] sm:$0xff]
    %v42 = vld [vmem:[%s2] sm:$0x1]
    %v44 = vlaneseq
    %v45 = vshrl.u32 %v44, 7
    %v46 = vsub.s32 0, %v45
    %v47 = vrot.slane %v42, %v46
    %vm49 = vcmask 523264
    %v51 = vsel %vm49, %v33, 0
    %53 = vmatprep.subr.mxu0 0.0
    %54 = vmatpush1.msra.mxu0 0.0
    %55 = vmatprep.subr.mxu0 0.0
    %56 = vmatpush1.msra.mxu0 0.0
    %57 = vmatprep.subr.mxu0 0.0
    %58 = vmatpush1.msra.mxu0 0.0
    %59 = vmatprep.subr.mxu0 0.0
    %60 = vmatpush1.msra.mxu0 0.0
    %61 = vmatprep.subr.mxu0 0.0
    %62 = vmatpush1.msra.mxu0 0.0
    %63 = vmatprep.subr.mxu0 0.0
    %64 = vmatpush1.msra.mxu0 0.0
    %65 = vmatprep.subr.mxu0 0.0
    %66 = vmatpush1.msra.mxu0 0.0
    %67 = vmatprep.subr.mxu0 0.0
    %68 = vmatpush1.msra.mxu0 0.0
    %69 = vmatprep.subr.mxu0 0.0
    %70 = vmatpush1.msra.mxu0 %v41
    %71 = vmatprep.subr.mxu0 0.0
    %72 = vmatpush1.msra.mxu0 %v40
    %73 = vmatprep.subr.mxu0 0.0
    %74 = vmatpush1.msra.mxu0 %v39
    %75 = vmatprep.subr.mxu0 0.0
    %76 = vmatpush1.msra.mxu0 %v38
    %77 = vmatprep.subr.mxu0 0.0
    %78 = vmatpush1.msra.mxu0 %v37
    %79 = vmatprep.subr.mxu0 0.0
    %80 = vmatpush1.msra.mxu0 %v36
    %81 = vmatprep.subr.mxu0 0.0
    %82 = vmatpush1.msra.mxu0 %v35
    %83 = vmatprep.subr.mxu0 0.0
    %84 = vmatpush1.msra.mxu0 %v34
    %85 = vmatprep.subr.mxu0 0.0
    %86 = vmatpush2.msra.mxu0 0.0
    %87 = vmatprep.subr.mxu0 0.0
    %88 = vmatpush2.msra.mxu0 0.0
    %89 = vmatprep.subr.mxu0 0.0
    %90 = vmatpush2.msra.mxu0 0.0
    %91 = vmatprep.subr.mxu0 0.0
    %92 = vmatpush2.msra.mxu0 0.0
    %93 = vmatprep.subr.mxu0 0.0
    %94 = vmatpush2.msra.mxu0 0.0
    %95 = vmatprep.subr.mxu0 0.0
    %96 = vmatpush2.msra.mxu0 0.0
    %97 = vmatprep.subr.mxu0 0.0
    %98 = vmatpush2.msra.mxu0 0.0
    %99 = vmatprep.subr.mxu0 0.0
    %100 = vmatpush2.msra.mxu0 0.0
    %101 = vmatprep.subr.mxu0 0.0
    %102 = vmatpush2.msra.mxu0 0.0
    %103 = vmatprep.subr.mxu0 0.0
    %104 = vmatpush2.msra.mxu0 0.0
    %105 = vmatprep.subr.mxu0 0.0
    %106 = vmatpush2.msra.mxu0 0.0
    %107 = vmatprep.subr.mxu0 0.0
    %108 = vmatpush2.msra.mxu0 0.0
    %109 = vmatprep.subr.mxu0 0.0
    %110 = vmatpush2.msra.mxu0 0.0
    %111 = vmatprep.subr.mxu0 0.0
    %112 = vmatpush2.msra.mxu0 0.0
    %113 = vmatprep.subr.mxu0 0.0
    %114 = vmatpush2.msra.mxu0 0.0
    %115 = vmatprep.subr.mxu0 0.0
    %116 = vmatpush2.msra.mxu0 0.0
    %117 = vmatprep.mubr.f32.mxu0 0.0
    %118 = vmatmul.mubr.f32.gmra.mxu0 %v51
    %v119 = vpop.f32.mrf.mxu0
    %v120 = vadd.f32 %v47, %v119
    %v121 = vpop.f32.mrf.mxu0
    %122 = vdwg.mxu0
    %v123 = vmax.f32 %v120, 0.0
    %v124 = vld [vmem:[%s3] sm:$0xff]
    %v125 = vld [vmem:[%s3 + $0x8] sm:$0xff]
    %v126 = vld [vmem:[%s3 + $0x10] sm:$0xff]
    %v127 = vld [vmem:[%s3 + $0x18] sm:$0xff]
    %v128 = vld [vmem:[%s3 + $0x20] sm:$0xff]
    %v129 = vld [vmem:[%s3 + $0x28] sm:$0xff]
    %v130 = vld [vmem:[%s3 + $0x30] sm:$0xff]
    %v131 = vld [vmem:[%s3 + $0x38] sm:$0xff]
    %v132 = vld [vmem:[%s3 + $0x40] sm:$0xff]
    %v133 = vld [vmem:[%s3 + $0x48] sm:$0xff]
    %v134 = vld [vmem:[%s3 + $0x50] sm:$0xff]
    %v135 = vld [vmem:[%s3 + $0x58] sm:$0xff]
    %v136 = vld [vmem:[%s3 + $0x60] sm:$0xff]
    %v137 = vld [vmem:[%s3 + $0x68] sm:$0xff]
    %v138 = vld [vmem:[%s4] sm:$0x1]
    %v140 = vlaneseq
    %v141 = vshrl.u32 %v140, 7
    %v142 = vsub.s32 0, %v141
    %v143 = vrot.slane %v138, %v142
    %vm145 = vcmask 916480
    %v147 = vsel %vm145, %v123, 0
    %149 = vmatprep.subr.mxu0 0.0
    %150 = vmatpush1.msra.mxu0 0.0
    %151 = vmatprep.subr.mxu0 0.0
    %152 = vmatpush1.msra.mxu0 0.0
    %153 = vmatprep.subr.mxu0 0.0
    %154 = vmatpush1.msra.mxu0 %v137
    %155 = vmatprep.subr.mxu0 0.0
    %156 = vmatpush1.msra.mxu0 %v136
    %157 = vmatprep.subr.mxu0 0.0
    %158 = vmatpush1.msra.mxu0 %v135
    %159 = vmatprep.subr.mxu0 0.0
    %160 = vmatpush1.msra.mxu0 %v134
    %161 = vmatprep.subr.mxu0 0.0
    %162 = vmatpush1.msra.mxu0 %v133
    %163 = vmatprep.subr.mxu0 0.0
    %164 = vmatpush1.msra.mxu0 %v132
    %165 = vmatprep.subr.mxu0 0.0
    %166 = vmatpush1.msra.mxu0 %v131
    %167 = vmatprep.subr.mxu0 0.0
    %168 = vmatpush1.msra.mxu0 %v130
    %169 = vmatprep.subr.mxu0 0.0
    %170 = vmatpush1.msra.mxu0 %v129
    %171 = vmatprep.subr.mxu0 0.0
    %172 = vmatpush1.msra.mxu0 %v128
    %173 = vmatprep.subr.mxu0 0.0
    %174 = vmatpush1.msra.mxu0 %v127
    %175 = vmatprep.subr.mxu0 0.0
    %176 = vmatpush1.msra.mxu0 %v126
    %177 = vmatprep.subr.mxu0 0.0
    %178 = vmatpush1.msra.mxu0 %v125
    %179 = vmatprep.subr.mxu0 0.0
    %180 = vmatpush1.msra.mxu0 %v124
    %181 = vmatprep.subr.mxu0 0.0
    %182 = vmatpush2.msra.mxu0 0.0
    %183 = vmatprep.subr.mxu0 0.0
    %184 = vmatpush2.msra.mxu0 0.0
    %185 = vmatprep.subr.mxu0 0.0
    %186 = vmatpush2.msra.mxu0 0.0
    %187 = vmatprep.subr.mxu0 0.0
    %188 = vmatpush2.msra.mxu0 0.0
    %189 = vmatprep.subr.mxu0 0.0
    %190 = vmatpush2.msra.mxu0 0.0
    %191 = vmatprep.subr.mxu0 0.0
    %192 = vmatpush2.msra.mxu0 0.0
    %193 = vmatprep.subr.mxu0 0.0
    %194 = vmatpush2.msra.mxu0 0.0
    %195 = vmatprep.subr.mxu0 0.0
    %196 = vmatpush2.msra.mxu0 0.0
    %197 = vmatprep.subr.mxu0 0.0
    %198 = vmatpush2.msra.mxu0 0.0
    %199 = vmatprep.subr.mxu0 0.0
    %200 = vmatpush2.msra.mxu0 0.0
    %201 = vmatprep.subr.mxu0 0.0
    %202 = vmatpush2.msra.mxu0 0.0
    %203 = vmatprep.subr.mxu0 0.0
    %204 = vmatpush2.msra.mxu0 0.0
    %205 = vmatprep.subr.mxu0 0.0
    %206 = vmatpush2.msra.mxu0 0.0
    %207 = vmatprep.subr.mxu0 0.0
    %208 = vmatpush2.msra.mxu0 0.0
    %209 = vmatprep.subr.mxu0 0.0
    %210 = vmatpush2.msra.mxu0 0.0
    %211 = vmatprep.subr.mxu0 0.0
    %212 = vmatpush2.msra.mxu0 0.0
    %213 = vmatprep.mubr.f32.mxu0 0.0
    %214 = vmatmul.mubr.f32.gmra.mxu0 %v147
    %v215 = vpop.f32.mrf.mxu0
    %v216 = vadd.f32 %v143, %v215
    %v217 = vpop.f32.mrf.mxu0
    %218 = vdwg.mxu0
    %v219 = vmax.f32 %v216, 0.0
    %v220 = vld [vmem:[%s5] sm:$0xff]
    %v221 = vld [vmem:[%s5 + $0x8] sm:$0xff]
    %v222 = vld [vmem:[%s5 + $0x10] sm:$0xff]
    %v223 = vld [vmem:[%s5 + $0x18] sm:$0xff]
    %v224 = vld [vmem:[%s5 + $0x20] sm:$0xff]
    %v225 = vld [vmem:[%s5 + $0x28] sm:$0xff]
    %v226 = vld [vmem:[%s5 + $0x30] sm:$0xff]
    %v227 = vld [vmem:[%s5 + $0x38] sm:$0xff]
    %v228 = vld [vmem:[%s5 + $0x40] sm:$0xff]
    %v229 = vld [vmem:[%s5 + $0x48] sm:$0xff]
    %v230 = vld [vmem:[%s5 + $0x50] sm:$0xff]
    %v231 = vld [vmem:[%s5 + $0x58] sm:$0xff]
    %v232 = vld [vmem:[%s6] sm:$0x1]
    %v234 = vlaneseq
    %v235 = vshrl.u32 %v234, 7
    %v236 = vsub.s32 0, %v235
    %v237 = vrot.slane %v232, %v236
    %vm239 = vcmask 785408
    %v241 = vsel %vm239, %v219, 0
    %243 = vmatprep.subr.mxu0 0.0
    %244 = vmatpush1.msra.mxu0 0.0
    %245 = vmatprep.subr.mxu0 0.0
    %246 = vmatpush1.msra.mxu0 0.0
    %247 = vmatprep.subr.mxu0 0.0
    %248 = vmatpush1.msra.mxu0 0.0
    %249 = vmatprep.subr.mxu0 0.0
    %250 = vmatpush1.msra.mxu0 0.0
    %251 = vmatprep.subr.mxu0 0.0
    %252 = vmatpush1.msra.mxu0 %v231
    %253 = vmatprep.subr.mxu0 0.0
    %254 = vmatpush1.msra.mxu0 %v230
    %255 = vmatprep.subr.mxu0 0.0
    %256 = vmatpush1.msra.mxu0 %v229
    %257 = vmatprep.subr.mxu0 0.0
    %258 = vmatpush1.msra.mxu0 %v228
    %259 = vmatprep.subr.mxu0 0.0
    %260 = vmatpush1.msra.mxu0 %v227
    %261 = vmatprep.subr.mxu0 0.0
    %262 = vmatpush1.msra.mxu0 %v226
    %263 = vmatprep.subr.mxu0 0.0
    %264 = vmatpush1.msra.mxu0 %v225
    %265 = vmatprep.subr.mxu0 0.0
    %266 = vmatpush1.msra.mxu0 %v224
    %267 = vmatprep.subr.mxu0 0.0
    %268 = vmatpush1.msra.mxu0 %v223
    %269 = vmatprep.subr.mxu0 0.0
    %270 = vmatpush1.msra.mxu0 %v222
    %271 = vmatprep.subr.mxu0 0.0
    %272 = vmatpush1.msra.mxu0 %v221
    %273 = vmatprep.subr.mxu0 0.0
    %274 = vmatpush1.msra.mxu0 %v220
    %275 = vmatprep.subr.mxu0 0.0
    %276 = vmatpush2.msra.mxu0 0.0
    %277 = vmatprep.subr.mxu0 0.0
    %278 = vmatpush2.msra.mxu0 0.0
    %279 = vmatprep.subr.mxu0 0.0
    %280 = vmatpush2.msra.mxu0 0.0
    %281 = vmatprep.subr.mxu0 0.0
    %282 = vmatpush2.msra.mxu0 0.0
    %283 = vmatprep.subr.mxu0 0.0
    %284 = vmatpush2.msra.mxu0 0.0
    %285 = vmatprep.subr.mxu0 0.0
    %286 = vmatpush2.msra.mxu0 0.0
    %287 = vmatprep.subr.mxu0 0.0
    %288 = vmatpush2.msra.mxu0 0.0
    %289 = vmatprep.subr.mxu0 0.0
    %290 = vmatpush2.msra.mxu0 0.0
    %291 = vmatprep.subr.mxu0 0.0
    %292 = vmatpush2.msra.mxu0 0.0
    %293 = vmatprep.subr.mxu0 0.0
    %294 = vmatpush2.msra.mxu0 0.0
    %295 = vmatprep.subr.mxu0 0.0
    %296 = vmatpush2.msra.mxu0 0.0
    %297 = vmatprep.subr.mxu0 0.0
    %298 = vmatpush2.msra.mxu0 0.0
    %299 = vmatprep.subr.mxu0 0.0
    %300 = vmatpush2.msra.mxu0 0.0
    %301 = vmatprep.subr.mxu0 0.0
    %302 = vmatpush2.msra.mxu0 0.0
    %303 = vmatprep.subr.mxu0 0.0
    %304 = vmatpush2.msra.mxu0 0.0
    %305 = vmatprep.subr.mxu0 0.0
    %306 = vmatpush2.msra.mxu0 0.0
    %307 = vmatprep.mubr.f32.mxu0 0.0
    %308 = vmatmul.mubr.f32.gmra.mxu0 %v241
    %v309 = vpop.f32.mrf.mxu0
    %v310 = vadd.f32 %v237, %v309
    %v311 = vpop.f32.mrf.mxu0
    %312 = vdwg.mxu0
    %v313 = vmax.f32 %v310, 0.0
    %v314 = vld [vmem:[%s7] sm:$0xff]
    %v315 = vld [vmem:[%s7 + $0x8] sm:$0xff]
    %v316 = vld [vmem:[%s7 + $0x10] sm:$0xff]
    %v317 = vld [vmem:[%s7 + $0x18] sm:$0xff]
    %v318 = vld [vmem:[%s8] sm:$0x1]
    %v320 = vlaneseq
    %v321 = vshrl.u32 %v320, 7
    %v322 = vsub.s32 0, %v321
    %v323 = vrot.slane %v318, %v322
    %vm325 = vcmask 261120
    %v327 = vsel %vm325, %v313, 0
    %329 = vmatprep.subr.mxu0 0.0
    %330 = vmatpush1.msra.mxu0 0.0
    %331 = vmatprep.subr.mxu0 0.0
    %332 = vmatpush1.msra.mxu0 0.0
    %333 = vmatprep.subr.mxu0 0.0
    %334 = vmatpush1.msra.mxu0 0.0
    %335 = vmatprep.subr.mxu0 0.0
    %336 = vmatpush1.msra.mxu0 0.0
    %337 = vmatprep.subr.mxu0 0.0
    %338 = vmatpush1.msra.mxu0 0.0
    %339 = vmatprep.subr.mxu0 0.0
    %340 = vmatpush1.msra.mxu0 0.0
    %341 = vmatprep.subr.mxu0 0.0
    %342 = vmatpush1.msra.mxu0 0.0
    %343 = vmatprep.subr.mxu0 0.0
    %344 = vmatpush1.msra.mxu0 0.0
    %345 = vmatprep.subr.mxu0 0.0
    %346 = vmatpush1.msra.mxu0 0.0
    %347 = vmatprep.subr.mxu0 0.0
    %348 = vmatpush1.msra.mxu0 0.0
    %349 = vmatprep.subr.mxu0 0.0
    %350 = vmatpush1.msra.mxu0 0.0
    %351 = vmatprep.subr.mxu0 0.0
    %352 = vmatpush1.msra.mxu0 0.0
    %353 = vmatprep.subr.mxu0 0.0
    %354 = vmatpush1.msra.mxu0 %v317
    %355 = vmatprep.subr.mxu0 0.0
    %356 = vmatpush1.msra.mxu0 %v316
    %357 = vmatprep.subr.mxu0 0.0
    %358 = vmatpush1.msra.mxu0 %v315
    %359 = vmatprep.subr.mxu0 0.0
    %360 = vmatpush1.msra.mxu0 %v314
    %361 = vmatprep.subr.mxu0 0.0
    %362 = vmatpush2.msra.mxu0 0.0
    %363 = vmatprep.subr.mxu0 0.0
    %364 = vmatpush2.msra.mxu0 0.0
    %365 = vmatprep.subr.mxu0 0.0
    %366 = vmatpush2.msra.mxu0 0.0
    %367 = vmatprep.subr.mxu0 0.0
    %368 = vmatpush2.msra.mxu0 0.0
    %369 = vmatprep.subr.mxu0 0.0
    %370 = vmatpush2.msra.mxu0 0.0
    %371 = vmatprep.subr.mxu0 0.0
    %372 = vmatpush2.msra.mxu0 0.0
    %373 = vmatprep.subr.mxu0 0.0
    %374 = vmatpush2.msra.mxu0 0.0
    %375 = vmatprep.subr.mxu0 0.0
    %376 = vmatpush2.msra.mxu0 0.0
    %377 = vmatprep.subr.mxu0 0.0
    %378 = vmatpush2.msra.mxu0 0.0
    %379 = vmatprep.subr.mxu0 0.0
    %380 = vmatpush2.msra.mxu0 0.0
    %381 = vmatprep.subr.mxu0 0.0
    %382 = vmatpush2.msra.mxu0 0.0
    %383 = vmatprep.subr.mxu0 0.0
    %384 = vmatpush2.msra.mxu0 0.0
    %385 = vmatprep.subr.mxu0 0.0
    %386 = vmatpush2.msra.mxu0 0.0
    %387 = vmatprep.subr.mxu0 0.0
    %388 = vmatpush2.msra.mxu0 0.0
    %389 = vmatprep.subr.mxu0 0.0
    %390 = vmatpush2.msra.mxu0 0.0
    %391 = vmatprep.subr.mxu0 0.0
    %392 = vmatpush2.msra.mxu0 0.0
    %393 = vmatprep.mubr.f32.mxu0 0.0
    %394 = vmatmul.mubr.f32.gmra.mxu0 %v327
    %v395 = vpop.f32.mrf.mxu0
    %v396 = vadd.f32 %v323, %v395
    %v397 = vpop.f32.mrf.mxu0
    %398 = vdwg.mxu0
    %vm399 = vcmask 74752
    %400 = vst.msk [vmem:[#allocation2] sm:$0x3] %vm399, %v396
    // Predicated region
    $region38: #{double_cnn_forward.1} parent=1 // pred_check
      _
    $region39: #{double_cnn_forward.1} parent=1 // pred_check_branch
      %402 = sbr.rel (0) target = $region41
    $region40: #{double_cnn_forward.1} parent=1 // pred_region
      %s404 = ssub.s32 32, 32
      %405 = vsyncadd [#allocation3], %s404
      %s407 = sshll.u32 [#allocation2], 4
      %s408 = int_to_ptr.vmem [resolvable:$true] %s407
      %410 = dma.vmem_to_hbm [thread:$0]  %s408, 32, %s9, [#allocation3]
    $region41: #{double_cnn_forward.1} parent=1 // pred_fallthru
      _
    // Predicated region
    $region42: #{double_cnn_forward.1} parent=1 // pred_check
      _
    $region43: #{double_cnn_forward.1} parent=1 // pred_check_branch
      %412 = sbr.rel (0) target = $region45
    $region44: #{double_cnn_forward.1} parent=1 // pred_region
      %413 = dma.done [#allocation3], 32
    $region45: #{double_cnn_forward.1} parent=1 // pred_fallthru
      _
    %414 = vsyncpa [#allocation3], 1

</llo_original>
